<compile_context>
chip_gen: v6e
topology: v6e:2x2x1
jax: 0.10.0
libtpu: 0.0.40
codegen_flags: <defaults>
</compile_context>

<pallas_src>
import functools

import jax
import jax.numpy as jnp
from jax.experimental import pallas as pl
from jax.experimental.pallas import tpu as pltpu

LANE = 128


def _elu(x):
    # ELU alpha=1.0 (PyTorch default); clamp exp arg so it never overflows.
    return jnp.where(x > 0, x, jnp.exp(jnp.minimum(x, 0.0)) - 1.0)


def make_vae_encoder_kernel(num_layers, lat_pad):
    """Fused MLP-encoder kernel.

    Ref order: x, (w0, b0, ..., w_{L-1}, b_{L-1}), eps, fused_out
      - final layer is pre-padded: its output is (TB, 2*lat_pad) with mean in
        lanes [0, lat_pad) and log-std in [lat_pad, 2*lat_pad).
      - fused_out is (TB, 3*lat_pad): [sample | mean | std].
    """

    def kernel(*refs):
        x_ref = refs[0]
        wb_refs = refs[1 : 1 + 2 * num_layers]
        eps_ref = refs[1 + 2 * num_layers]
        out_ref = refs[-1]

        h = x_ref[...].astype(jnp.float32)
        for i in range(num_layers):
            w = wb_refs[2 * i][...]
            b = wb_refs[2 * i + 1][...]
            h = jnp.dot(h, w, preferred_element_type=jnp.float32) + b
            if i < num_layers - 1:
                h = _elu(h)

        # Both slices are at 128-lane-aligned offsets (no cross-lane movement).
        mean = h[:, :lat_pad]
        std = jnp.exp(h[:, lat_pad : 2 * lat_pad])
        sample = mean + std * eps_ref[...]

        # Three unmasked, lane-aligned 128-wide stores into one dense slab.
        out_ref[:, 0:lat_pad] = sample.astype(out_ref.dtype)
        out_ref[:, lat_pad : 2 * lat_pad] = mean.astype(out_ref.dtype)
        out_ref[:, 2 * lat_pad : 3 * lat_pad] = std.astype(out_ref.dtype)

    return kernel


def init_vae_params(key, input_dim, latent_dim, mid_dims):
    """Deterministic PyTorch-style init: U(-1/sqrt(fan_in), 1/sqrt(fan_in)).

    Weights stored as (in_features, out_features) so the kernel does x @ W + b
    (== PyTorch's x @ W.T + b with W of shape (out, in)).
    """
    dims = [input_dim] + list(mid_dims) + [2 * latent_dim]
    params = []
    for i in range(len(dims) - 1):
        fan_in, fan_out = dims[i], dims[i + 1]
        key, kw, kb = jax.random.split(key, 3)
        bound = 1.0 / jnp.sqrt(jnp.float32(fan_in))
        w = jax.random.uniform(kw, (fan_in, fan_out), jnp.float32, -bound, bound)
        b = jax.random.uniform(kb, (1, fan_out), jnp.float32, -bound, bound)
        params.append((w, b))
    return params


def pad_final_layer(params, latent_dim, lane=LANE):
    """Zero-pad the last Linear so mean -> lanes [0, lat_pad) and log-std ->
    lanes [lat_pad, 2*lat_pad). Padded log-std columns are 0 -> std 1, which is
    harmless: only the first latent_dim lanes of each section are read back."""
    lat_pad = pl.cdiv(latent_dim, lane) * lane
    w, b = params[-1]
    fan_in = w.shape[0]
    w_pad = jnp.zeros((fan_in, 2 * lat_pad), w.dtype)
    w_pad = w_pad.at[:, :latent_dim].set(w[:, :latent_dim])
    w_pad = w_pad.at[:, lat_pad : lat_pad + latent_dim].set(w[:, latent_dim:])
    b_pad = jnp.zeros((1, 2 * lat_pad), b.dtype)
    b_pad = b_pad.at[:, :latent_dim].set(b[:, :latent_dim])
    b_pad = b_pad.at[:, lat_pad : lat_pad + latent_dim].set(b[:, latent_dim:])
    return params[:-1] + [(w_pad, b_pad)]


@functools.partial(jax.jit, static_argnames=("latent_dim", "block_batch"))
def vae_forward(x, params_flat, eps, *, latent_dim, block_batch=512):
    """Runs the fused, batch-gridded encoder kernel. Returns (sample, mean, std).

    `params_flat` must be the flattened output of pad_final_layer(...)."""
    num_layers = len(params_flat) // 2
    batch, input_dim = x.shape
    lat_pad = pl.cdiv(latent_dim, LANE) * LANE

    tb = min(block_batch, batch)
    n_blocks = pl.cdiv(batch, tb)
    padded_batch = n_blocks * tb

    # Pad eps to a lane-dense (batch, lat_pad) slab; pad ragged batch rows.
    eps_p = jnp.pad(eps, ((0, padded_batch - batch), (0, lat_pad - latent_dim)))
    x_p = jnp.pad(x, ((0, padded_batch - batch), (0, 0)))

    kernel = make_vae_encoder_kernel(num_layers, lat_pad)

    # x / eps / output stream over the batch grid; weights stay resident.
    in_specs = [pl.BlockSpec((tb, input_dim), lambda i: (i, 0))]
    for p in params_flat:
        in_specs.append(pl.BlockSpec(p.shape, lambda i: (0, 0)))
    in_specs.append(pl.BlockSpec((tb, lat_pad), lambda i: (i, 0)))
    out_spec = pl.BlockSpec((tb, 3 * lat_pad), lambda i: (i, 0))

    fused = pl.pallas_call(
        kernel,
        out_shape=jax.ShapeDtypeStruct((padded_batch, 3 * lat_pad), jnp.float32),
        grid=(n_blocks,),
        in_specs=in_specs,
        out_specs=out_spec,
        compiler_params=pltpu.CompilerParams(
            dimension_semantics=("parallel",),
        ),
    )(x_p, *params_flat, eps_p)

    sample = fused[:batch, 0:latent_dim]
    mean = fused[:batch, lat_pad : lat_pad + latent_dim]
    std = fused[:batch, 2 * lat_pad : 2 * lat_pad + latent_dim]
    return sample, mean, std


def vae_forward_ref(x, params_flat, eps, latent_dim):
    """Pure-JAX reference (unpadded params) for correctness checking."""
    num_layers = len(params_flat) // 2
    h = x
    for i in range(num_layers):
        w = params_flat[2 * i]
        b = params_flat[2 * i + 1]
        h = h @ w + b
        if i < num_layers - 1:
            h = jnp.where(h > 0, h, jnp.exp(jnp.minimum(h, 0.0)) - 1.0)
    mean = h[:, :latent_dim]
    std = jnp.exp(h[:, latent_dim:])
    return mean + std * eps, mean, std


if __name__ == "__main__":
    # Small shapes consistent with the module: an MLP VAE encoder.
    batch = 32
    input_dim = 32
    latent_dim = 16
    mid_dims = (64, 32)

    key = jax.random.PRNGKey(0)
    k_x, k_p, k_eps = jax.random.split(key, 3)

    x = jax.random.normal(k_x, (batch, input_dim), dtype=jnp.float32)
    params = init_vae_params(k_p, input_dim, latent_dim, mid_dims)
    # Reparameterization noise for Normal(mean, std).sample().
    # TODO(synk): could be generated in-kernel with pltpu.prng_seed/prng_random_bits
    # to save one HBM stream; kept as an input for deterministic checking.
    eps = jax.random.normal(k_eps, (batch, latent_dim), dtype=jnp.float32)

    # Kernel params: final layer padded so mean/log-std are 128-lane aligned.
    params_kernel = pad_final_layer(params, latent_dim)
    params_flat = tuple(a for wb in params_kernel for a in wb)

    # block_batch=8 -> grid of 4 steps at this tiny demo size (exercises the
    # batch pipeline); use a much larger block (<= a few thousand rows) for
    # real batches, sized under v7x's 64 MiB VMEM.
    sample, mean, std = vae_forward(
        x, params_flat, eps, latent_dim=latent_dim, block_batch=8
    )
    jax.block_until_ready((sample, mean, std))

    # Correctness check against pure-JAX reference on the unpadded params.
    ref_flat = [a for wb in params for a in wb]
    ref_sample, ref_mean, ref_std = vae_forward_ref(x, ref_flat, eps, latent_dim)
    assert jnp.allclose(mean, ref_mean, atol=1e-4, rtol=1e-4)
    assert jnp.allclose(std, ref_std, atol=1e-4, rtol=1e-4)
    assert jnp.allclose(sample, ref_sample, atol=1e-4, rtol=1e-4)

    print("KERNEL_OK")
</pallas_src>

<mosaic_0001>
module attributes {stable_mosaic.version = 11 : i64} {
  func.func @kernel(%arg0: i32, %arg1: memref<8x32xf32, #tpu.memory_space<vmem>>, %arg2: memref<32x64xf32, #tpu.memory_space<vmem>>, %arg3: memref<1x64xf32, #tpu.memory_space<vmem>>, %arg4: memref<64x32xf32, #tpu.memory_space<vmem>>, %arg5: memref<1x32xf32, #tpu.memory_space<vmem>>, %arg6: memref<32x256xf32, #tpu.memory_space<vmem>>, %arg7: memref<1x256xf32, #tpu.memory_space<vmem>>, %arg8: memref<8x128xf32, #tpu.memory_space<vmem>>, %arg9: memref<8x384xf32, #tpu.memory_space<vmem>>) attributes {dimension_semantics = [#tpu.dimension_semantics<parallel>], iteration_bounds = array<i64: 4>, scalar_prefetch = 0 : i64, scratch_operands = 0 : i64, tpu.core_type = #tpu.core_type<tc>, window_params = [{transform_indices = @transform_0, window_bounds = array<i64: 8, 32>}, {pipeline_mode = #tpu.pipeline_mode<synchronous>, transform_indices = @transform_1, window_bounds = array<i64: 32, 64>}, {pipeline_mode = #tpu.pipeline_mode<synchronous>, transform_indices = @transform_2, window_bounds = array<i64: 1, 64>}, {pipeline_mode = #tpu.pipeline_mode<synchronous>, transform_indices = @transform_3, window_bounds = array<i64: 64, 32>}, {pipeline_mode = #tpu.pipeline_mode<synchronous>, transform_indices = @transform_4, window_bounds = array<i64: 1, 32>}, {pipeline_mode = #tpu.pipeline_mode<synchronous>, transform_indices = @transform_5, window_bounds = array<i64: 32, 256>}, {pipeline_mode = #tpu.pipeline_mode<synchronous>, transform_indices = @transform_6, window_bounds = array<i64: 1, 256>}, {transform_indices = @transform_7, window_bounds = array<i64: 8, 128>}, {transform_indices = @transform_8, window_bounds = array<i64: 8, 384>}]} {
    %c0 = arith.constant 0 : index
    %c0_0 = arith.constant 0 : index
    %0 = vector.load %arg1[%c0, %c0_0] : memref<8x32xf32, #tpu.memory_space<vmem>>, vector<8x32xf32>
    %c0_1 = arith.constant 0 : index
    %c0_2 = arith.constant 0 : index
    %1 = vector.load %arg2[%c0_1, %c0_2] : memref<32x64xf32, #tpu.memory_space<vmem>>, vector<32x64xf32>
    %c0_3 = arith.constant 0 : index
    %c0_4 = arith.constant 0 : index
    %2 = vector.load %arg3[%c0_3, %c0_4] : memref<1x64xf32, #tpu.memory_space<vmem>>, vector<1x64xf32>
    %cst = arith.constant dense<0.000000e+00> : vector<8x64xf32>
    %3 = tpu.matmul %0, %1, %cst {dimension_numbers = #tpu.dot_dimension_numbers<[1], [0], [0], [1], [0, 0, 1, 1], [], []>} : vector<8x32xf32>, vector<32x64xf32>, vector<8x64xf32> -> vector<8x64xf32>
    %4 = vector.broadcast %2 : vector<1x64xf32> to vector<8x64xf32>
    %5 = arith.addf %3, %4 : vector<8x64xf32>
    %cst_5 = arith.constant 0.000000e+00 : f32
    %6 = vector.broadcast %cst_5 : f32 to vector<8x64xf32>
    %7 = arith.cmpf ogt, %5, %6 : vector<8x64xf32>
    %cst_6 = arith.constant 0.000000e+00 : f32
    %8 = vector.broadcast %cst_6 : f32 to vector<8x64xf32>
    %9 = arith.minimumf %5, %8 : vector<8x64xf32>
    %10 = math.exp %9 : vector<8x64xf32>
    %cst_7 = arith.constant 1.000000e+00 : f32
    %11 = vector.broadcast %cst_7 : f32 to vector<8x64xf32>
    %12 = arith.subf %10, %11 : vector<8x64xf32>
    %13 = arith.select %7, %5, %12 : vector<8x64xi1>, vector<8x64xf32>
    %c0_8 = arith.constant 0 : index
    %c0_9 = arith.constant 0 : index
    %14 = vector.load %arg4[%c0_8, %c0_9] : memref<64x32xf32, #tpu.memory_space<vmem>>, vector<64x32xf32>
    %c0_10 = arith.constant 0 : index
    %c0_11 = arith.constant 0 : index
    %15 = vector.load %arg5[%c0_10, %c0_11] : memref<1x32xf32, #tpu.memory_space<vmem>>, vector<1x32xf32>
    %cst_12 = arith.constant dense<0.000000e+00> : vector<8x32xf32>
    %16 = tpu.matmul %13, %14, %cst_12 {dimension_numbers = #tpu.dot_dimension_numbers<[1], [0], [0], [1], [0, 0, 1, 1], [], []>} : vector<8x64xf32>, vector<64x32xf32>, vector<8x32xf32> -> vector<8x32xf32>
    %17 = vector.broadcast %15 : vector<1x32xf32> to vector<8x32xf32>
    %18 = arith.addf %16, %17 : vector<8x32xf32>
    %cst_13 = arith.constant 0.000000e+00 : f32
    %19 = vector.broadcast %cst_13 : f32 to vector<8x32xf32>
    %20 = arith.cmpf ogt, %18, %19 : vector<8x32xf32>
    %cst_14 = arith.constant 0.000000e+00 : f32
    %21 = vector.broadcast %cst_14 : f32 to vector<8x32xf32>
    %22 = arith.minimumf %18, %21 : vector<8x32xf32>
    %23 = math.exp %22 : vector<8x32xf32>
    %cst_15 = arith.constant 1.000000e+00 : f32
    %24 = vector.broadcast %cst_15 : f32 to vector<8x32xf32>
    %25 = arith.subf %23, %24 : vector<8x32xf32>
    %26 = arith.select %20, %18, %25 : vector<8x32xi1>, vector<8x32xf32>
    %c0_16 = arith.constant 0 : index
    %c0_17 = arith.constant 0 : index
    %27 = vector.load %arg6[%c0_16, %c0_17] : memref<32x256xf32, #tpu.memory_space<vmem>>, vector<32x256xf32>
    %c0_18 = arith.constant 0 : index
    %c0_19 = arith.constant 0 : index
    %28 = vector.load %arg7[%c0_18, %c0_19] : memref<1x256xf32, #tpu.memory_space<vmem>>, vector<1x256xf32>
    %cst_20 = arith.constant dense<0.000000e+00> : vector<8x256xf32>
    %29 = tpu.matmul %26, %27, %cst_20 {dimension_numbers = #tpu.dot_dimension_numbers<[1], [0], [0], [1], [0, 0, 1, 1], [], []>} : vector<8x32xf32>, vector<32x256xf32>, vector<8x256xf32> -> vector<8x256xf32>
    %30 = vector.broadcast %28 : vector<1x256xf32> to vector<8x256xf32>
    %31 = arith.addf %29, %30 : vector<8x256xf32>
    %32 = vector.extract_strided_slice %31 {offsets = [0, 0], sizes = [8, 128], strides = [1, 1]} : vector<8x256xf32> to vector<8x128xf32>
    %33 = vector.extract_strided_slice %31 {offsets = [0, 128], sizes = [8, 128], strides = [1, 1]} : vector<8x256xf32> to vector<8x128xf32>
    %34 = math.exp %33 : vector<8x128xf32>
    %c0_21 = arith.constant 0 : index
    %c0_22 = arith.constant 0 : index
    %35 = vector.load %arg8[%c0_21, %c0_22] : memref<8x128xf32, #tpu.memory_space<vmem>>, vector<8x128xf32>
    %36 = arith.mulf %34, %35 : vector<8x128xf32>
    %37 = arith.addf %32, %36 : vector<8x128xf32>
    %c0_23 = arith.constant 0 : index
    %c0_24 = arith.constant 0 : index
    %38 = vector.load %arg9[%c0_23, %c0_24] : memref<8x384xf32, #tpu.memory_space<vmem>>, vector<8x128xf32>
    tpu.vector_store %arg9[%c0_23, %c0_24], %37 {strides = array<i32>} : memref<8x384xf32, #tpu.memory_space<vmem>>, vector<8x128xf32>,
    %c0_25 = arith.constant 0 : index
    %c128 = arith.constant 128 : index
    %39 = vector.load %arg9[%c0_25, %c128] : memref<8x384xf32, #tpu.memory_space<vmem>>, vector<8x128xf32>
    tpu.vector_store %arg9[%c0_25, %c128], %32 {strides = array<i32>} : memref<8x384xf32, #tpu.memory_space<vmem>>, vector<8x128xf32>,
    %c0_26 = arith.constant 0 : index
    %c256 = arith.constant 256 : index
    %40 = vector.load %arg9[%c0_26, %c256] : memref<8x384xf32, #tpu.memory_space<vmem>>, vector<8x128xf32>
    tpu.vector_store %arg9[%c0_26, %c256], %34 {strides = array<i32>} : memref<8x384xf32, #tpu.memory_space<vmem>>, vector<8x128xf32>,
    return
  }
  func.func @transform_0(%arg0: i32) -> (i32, i32) {
    %c0_i32 = arith.constant 0 : i32
    %c0_i32_0 = arith.constant 0 : i32
    return %arg0, %c0_i32 : i32, i32
  }
  func.func @transform_1(%arg0: i32) -> (i32, i32) {
    %c0_i32 = arith.constant 0 : i32
    %c0_i32_0 = arith.constant 0 : i32
    %c0_i32_1 = arith.constant 0 : i32
    return %c0_i32, %c0_i32_0 : i32, i32
  }
  func.func @transform_2(%arg0: i32) -> (i32, i32) {
    %c0_i32 = arith.constant 0 : i32
    %c0_i32_0 = arith.constant 0 : i32
    %c0_i32_1 = arith.constant 0 : i32
    return %c0_i32, %c0_i32_0 : i32, i32
  }
  func.func @transform_3(%arg0: i32) -> (i32, i32) {
    %c0_i32 = arith.constant 0 : i32
    %c0_i32_0 = arith.constant 0 : i32
    %c0_i32_1 = arith.constant 0 : i32
    return %c0_i32, %c0_i32_0 : i32, i32
  }
  func.func @transform_4(%arg0: i32) -> (i32, i32) {
    %c0_i32 = arith.constant 0 : i32
    %c0_i32_0 = arith.constant 0 : i32
    %c0_i32_1 = arith.constant 0 : i32
    return %c0_i32, %c0_i32_0 : i32, i32
  }
  func.func @transform_5(%arg0: i32) -> (i32, i32) {
    %c0_i32 = arith.constant 0 : i32
    %c0_i32_0 = arith.constant 0 : i32
    %c0_i32_1 = arith.constant 0 : i32
    return %c0_i32, %c0_i32_0 : i32, i32
  }
  func.func @transform_6(%arg0: i32) -> (i32, i32) {
    %c0_i32 = arith.constant 0 : i32
    %c0_i32_0 = arith.constant 0 : i32
    %c0_i32_1 = arith.constant 0 : i32
    return %c0_i32, %c0_i32_0 : i32, i32
  }
  func.func @transform_7(%arg0: i32) -> (i32, i32) {
    %c0_i32 = arith.constant 0 : i32
    %c0_i32_0 = arith.constant 0 : i32
    return %arg0, %c0_i32 : i32, i32
  }
  func.func @transform_8(%arg0: i32) -> (i32, i32) {
    %c0_i32 = arith.constant 0 : i32
    %c0_i32_0 = arith.constant 0 : i32
    return %arg0, %c0_i32 : i32, i32
  }
}

</mosaic_0001>

<llo_original>
// kernel: vae_forward.1
$region0: #{vae_forward.1}
  #allocation0 [shape = 'u32[]', space=smem, size = 0x4, offset = 0x4, fixed_abs, tag = 'smem constant byte address 0x4 - core index']
  #allocation1 [shape = 'u32[144,128]{1,0:T(1,128)}', space=vmem, size = 0x12000, scoped, tag = 'internal scratch']
  %s0 = inlined_call_operand.vmem [shape: f32[32,32], index: 0, kind: input, shape index: {}]
  %s1 = inlined_call_operand.vmem [shape: f32[32,64], index: 1, kind: input, shape index: {}]
  %s2 = inlined_call_operand.vmem [shape: f32[1,64], index: 2, kind: input, shape index: {}]
  %s3 = inlined_call_operand.vmem [shape: f32[64,32], index: 3, kind: input, shape index: {}]
  %s4 = inlined_call_operand.vmem [shape: f32[1,32], index: 4, kind: input, shape index: {}]
  %s5 = inlined_call_operand.vmem [shape: f32[32,256], index: 5, kind: input, shape index: {}]
  %s6 = inlined_call_operand.vmem [shape: f32[1,256], index: 6, kind: input, shape index: {}]
  %s7 = inlined_call_operand.vmem [shape: f32[32,128], index: 7, kind: input, shape index: {}]
  %s8 = inlined_call_operand.vmem [shape: f32[32,384], index: 8, kind: output, shape index: {}]
  %s9 = sld [smem:[#allocation0]]
  $region65: #{vae_forward.1} parent=0
    _
  %s11 = ssub.s32 1, %s9
  %s12 = scalar_select 0, %s11, %s9
  loop: start=0, step=1, limit=6
  $region2: #{vae_forward.1} parent=0 // loop_pre_header
    _
  $region3: #{vae_forward.1} parent=0 // loop_header
    %s14 = sphi 0, %s18
    %p15 = scmp.ge.s32.totalorder %s14, 6
    %s24 = sphi 0, %s26
    %s27 = sphi 0, %s24
    %s28 = sphi 0, %s27
    %s44 = sphi 0, %s28
    %s48 = sphi 0, %s48
    %s50 = sphi 0, %s48
    %s51 = sphi 0, %s50
    %s65 = sphi 0, %s51
    %s69 = sphi 0, %s69
    %s71 = sphi 0, %s69
    %s72 = sphi 0, %s71
    %s86 = sphi 0, %s72
    %s90 = sphi 0, %s90
    %s92 = sphi 0, %s90
    %s93 = sphi 0, %s92
    %s107 = sphi 0, %s93
    %s111 = sphi 0, %s111
    %s113 = sphi 0, %s111
    %s114 = sphi 0, %s113
    %s128 = sphi 0, %s114
    %s132 = sphi 0, %s132
    %s134 = sphi 0, %s132
    %s135 = sphi 0, %s134
    %s149 = sphi 0, %s135
    %s153 = sphi 0, %s153
    %s155 = sphi 0, %s153
    %s156 = sphi 0, %s155
    %s170 = sphi 0, %s156
    %s176 = sphi 0, %s178
    %s179 = sphi 0, %s176
    %s180 = sphi 0, %s179
    %s196 = sphi 0, %s180
    %s202 = sphi 0, %s204
    %s205 = sphi 0, %s202
    %s206 = sphi 0, %s205
    %s222 = sphi 0, %s206
  $region4: #{vae_forward.1} parent=0 // loop_header_branch
    %17 = sbr.rel (%p15) target = $region8
  $region5: #{vae_forward.1} parent=0 // loop_body
    %s19 = ssub.s32 %s14, 1
    %s20 = ssub.s32 %s14, 2
    %s21 = sadd.s32 %s14, 1
    %s22 = ssub.s32 %s14, %s21
    %p23 = scmp.eq.s32.totalorder %s22, 0
    %s25 = sadd.s32 %s24, 1
    %s26 = scalar_select %p23, %s24, %s25
    %p29 = pneg %p23
    %p30 = scmp.eq.s32.totalorder %s14, 3
    %p31 = por %p29, %p30
    %p32 = scmp.ne.s32.totalorder %s24, %s27
    %p33 = scmp.eq.s32.totalorder %s14, 0
    %p34 = por %p32, %p33
    %p35 = scmp.ne.s32.totalorder %s24, %s27
    %p36 = scmp.eq.s32.totalorder %s19, 3
    %p37 = por %p35, %p36
    %p38 = scmp.ne.s32.totalorder %s27, %s28
    %p39 = scmp.eq.s32.totalorder %s19, 0
    %p40 = por %p38, %p39
    %p41 = scmp.ne.s32.totalorder %s27, %s28
    %p42 = scmp.eq.s32.totalorder %s20, 3
    %p43 = por %p41, %p42
    %p45 = scmp.ne.s32.totalorder %s28, %s44
    %p46 = scmp.eq.s32.totalorder %s20, 0
    %p47 = por %p45, %p46
    %s49 = sadd.s32 %s48, 1
    %p52 = scmp.eq.s32.totalorder %s14, 3
    %p53 = scmp.ne.s32.totalorder %s48, %s50
    %p54 = scmp.eq.s32.totalorder %s14, 0
    %p55 = por %p53, %p54
    %p56 = scmp.ne.s32.totalorder %s48, %s50
    %p57 = scmp.eq.s32.totalorder %s19, 3
    %p58 = por %p56, %p57
    %p59 = scmp.ne.s32.totalorder %s50, %s51
    %p60 = scmp.eq.s32.totalorder %s19, 0
    %p61 = por %p59, %p60
    %p62 = scmp.ne.s32.totalorder %s50, %s51
    %p63 = scmp.eq.s32.totalorder %s20, 3
    %p64 = por %p62, %p63
    %p66 = scmp.ne.s32.totalorder %s51, %s65
    %p67 = scmp.eq.s32.totalorder %s20, 0
    %p68 = por %p66, %p67
    %s70 = sadd.s32 %s69, 1
    %p73 = scmp.eq.s32.totalorder %s14, 3
    %p74 = scmp.ne.s32.totalorder %s69, %s71
    %p75 = scmp.eq.s32.totalorder %s14, 0
    %p76 = por %p74, %p75
    %p77 = scmp.ne.s32.totalorder %s69, %s71
    %p78 = scmp.eq.s32.totalorder %s19, 3
    %p79 = por %p77, %p78
    %p80 = scmp.ne.s32.totalorder %s71, %s72
    %p81 = scmp.eq.s32.totalorder %s19, 0
    %p82 = por %p80, %p81
    %p83 = scmp.ne.s32.totalorder %s71, %s72
    %p84 = scmp.eq.s32.totalorder %s20, 3
    %p85 = por %p83, %p84
    %p87 = scmp.ne.s32.totalorder %s72, %s86
    %p88 = scmp.eq.s32.totalorder %s20, 0
    %p89 = por %p87, %p88
    %s91 = sadd.s32 %s90, 1
    %p94 = scmp.eq.s32.totalorder %s14, 3
    %p95 = scmp.ne.s32.totalorder %s90, %s92
    %p96 = scmp.eq.s32.totalorder %s14, 0
    %p97 = por %p95, %p96
    %p98 = scmp.ne.s32.totalorder %s90, %s92
    %p99 = scmp.eq.s32.totalorder %s19, 3
    %p100 = por %p98, %p99
    %p101 = scmp.ne.s32.totalorder %s92, %s93
    %p102 = scmp.eq.s32.totalorder %s19, 0
    %p103 = por %p101, %p102
    %p104 = scmp.ne.s32.totalorder %s92, %s93
    %p105 = scmp.eq.s32.totalorder %s20, 3
    %p106 = por %p104, %p105
    %p108 = scmp.ne.s32.totalorder %s93, %s107
    %p109 = scmp.eq.s32.totalorder %s20, 0
    %p110 = por %p108, %p109
    %s112 = sadd.s32 %s111, 1
    %p115 = scmp.eq.s32.totalorder %s14, 3
    %p116 = scmp.ne.s32.totalorder %s111, %s113
    %p117 = scmp.eq.s32.totalorder %s14, 0
    %p118 = por %p116, %p117
    %p119 = scmp.ne.s32.totalorder %s111, %s113
    %p120 = scmp.eq.s32.totalorder %s19, 3
    %p121 = por %p119, %p120
    %p122 = scmp.ne.s32.totalorder %s113, %s114
    %p123 = scmp.eq.s32.totalorder %s19, 0
    %p124 = por %p122, %p123
    %p125 = scmp.ne.s32.totalorder %s113, %s114
    %p126 = scmp.eq.s32.totalorder %s20, 3
    %p127 = por %p125, %p126
    %p129 = scmp.ne.s32.totalorder %s114, %s128
    %p130 = scmp.eq.s32.totalorder %s20, 0
    %p131 = por %p129, %p130
    %s133 = sadd.s32 %s132, 1
    %p136 = scmp.eq.s32.totalorder %s14, 3
    %p137 = scmp.ne.s32.totalorder %s132, %s134
    %p138 = scmp.eq.s32.totalorder %s14, 0
    %p139 = por %p137, %p138
    %p140 = scmp.ne.s32.totalorder %s132, %s134
    %p141 = scmp.eq.s32.totalorder %s19, 3
    %p142 = por %p140, %p141
    %p143 = scmp.ne.s32.totalorder %s134, %s135
    %p144 = scmp.eq.s32.totalorder %s19, 0
    %p145 = por %p143, %p144
    %p146 = scmp.ne.s32.totalorder %s134, %s135
    %p147 = scmp.eq.s32.totalorder %s20, 3
    %p148 = por %p146, %p147
    %p150 = scmp.ne.s32.totalorder %s135, %s149
    %p151 = scmp.eq.s32.totalorder %s20, 0
    %p152 = por %p150, %p151
    %s154 = sadd.s32 %s153, 1
    %p157 = scmp.eq.s32.totalorder %s14, 3
    %p158 = scmp.ne.s32.totalorder %s153, %s155
    %p159 = scmp.eq.s32.totalorder %s14, 0
    %p160 = por %p158, %p159
    %p161 = scmp.ne.s32.totalorder %s153, %s155
    %p162 = scmp.eq.s32.totalorder %s19, 3
    %p163 = por %p161, %p162
    %p164 = scmp.ne.s32.totalorder %s155, %s156
    %p165 = scmp.eq.s32.totalorder %s19, 0
    %p166 = por %p164, %p165
    %p167 = scmp.ne.s32.totalorder %s155, %s156
    %p168 = scmp.eq.s32.totalorder %s20, 3
    %p169 = por %p167, %p168
    %p171 = scmp.ne.s32.totalorder %s156, %s170
    %p172 = scmp.eq.s32.totalorder %s20, 0
    %p173 = por %p171, %p172
    %s174 = ssub.s32 %s14, %s21
    %p175 = scmp.eq.s32.totalorder %s174, 0
    %s177 = sadd.s32 %s176, 1
    %s178 = scalar_select %p175, %s176, %s177
    %p181 = pneg %p175
    %p182 = scmp.eq.s32.totalorder %s14, 3
    %p183 = por %p181, %p182
    %p184 = scmp.ne.s32.totalorder %s176, %s179
    %p185 = scmp.eq.s32.totalorder %s14, 0
    %p186 = por %p184, %p185
    %p187 = scmp.ne.s32.totalorder %s176, %s179
    %p188 = scmp.eq.s32.totalorder %s19, 3
    %p189 = por %p187, %p188
    %p190 = scmp.ne.s32.totalorder %s179, %s180
    %p191 = scmp.eq.s32.totalorder %s19, 0
    %p192 = por %p190, %p191
    %p193 = scmp.ne.s32.totalorder %s179, %s180
    %p194 = scmp.eq.s32.totalorder %s20, 3
    %p195 = por %p193, %p194
    %p197 = scmp.ne.s32.totalorder %s180, %s196
    %p198 = scmp.eq.s32.totalorder %s20, 0
    %p199 = por %p197, %p198
    %s200 = ssub.s32 %s14, %s21
    %p201 = scmp.eq.s32.totalorder %s200, 0
    %s203 = sadd.s32 %s202, 1
    %s204 = scalar_select %p201, %s202, %s203
    %p207 = pneg %p201
    %p208 = scmp.eq.s32.totalorder %s14, 3
    %p209 = por %p207, %p208
    %p210 = scmp.ne.s32.totalorder %s202, %s205
    %p211 = scmp.eq.s32.totalorder %s14, 0
    %p212 = por %p210, %p211
    %p213 = scmp.ne.s32.totalorder %s202, %s205
    %p214 = scmp.eq.s32.totalorder %s19, 3
    %p215 = por %p213, %p214
    %p216 = scmp.ne.s32.totalorder %s205, %s206
    %p217 = scmp.eq.s32.totalorder %s19, 0
    %p218 = por %p216, %p217
    %p219 = scmp.ne.s32.totalorder %s205, %s206
    %p220 = scmp.eq.s32.totalorder %s20, 3
    %p221 = por %p219, %p220
    %p223 = scmp.ne.s32.totalorder %s206, %s222
    %p224 = scmp.eq.s32.totalorder %s20, 0
    %p225 = por %p223, %p224
    %p226 = scmp.le.s32.totalorder 1, %s14
    %p227 = scmp.lt.s32.totalorder %s14, 5
    %p228 = pnand %p226, %p227
    %p229 = pneg %p228
    // Predicated region
    $region9: #{vae_forward.1} parent=5 // pred_check
      _
    $region10: #{vae_forward.1} parent=5 // pred_check_branch
      %231 = sbr.rel (%p228) target = $region12
    $region11: #{vae_forward.1} parent=5 // pred_region
      %s232 = ssub.s32 %s14, 1
      // Predicated region
      $region13: #{vae_forward.1} parent=11 // pred_check
        %p233 = pneg %p61
      $region14: #{vae_forward.1} parent=11 // pred_check_branch
        %235 = sbr.rel (%p233) target = $region16
      $region15: #{vae_forward.1} parent=11 // pred_region
        _
      $region16: #{vae_forward.1} parent=11 // pred_fallthru
        _
      // Predicated region
      $region17: #{vae_forward.1} parent=11 // pred_check
        %p236 = pneg %p82
      $region18: #{vae_forward.1} parent=11 // pred_check_branch
        %238 = sbr.rel (%p236) target = $region20
      $region19: #{vae_forward.1} parent=11 // pred_region
        _
      $region20: #{vae_forward.1} parent=11 // pred_fallthru
        _
      // Predicated region
      $region21: #{vae_forward.1} parent=11 // pred_check
        %p239 = pneg %p103
      $region22: #{vae_forward.1} parent=11 // pred_check_branch
        %241 = sbr.rel (%p239) target = $region24
      $region23: #{vae_forward.1} parent=11 // pred_region
        _
      $region24: #{vae_forward.1} parent=11 // pred_fallthru
        _
      // Predicated region
      $region25: #{vae_forward.1} parent=11 // pred_check
        %p242 = pneg %p124
      $region26: #{vae_forward.1} parent=11 // pred_check_branch
        %244 = sbr.rel (%p242) target = $region28
      $region27: #{vae_forward.1} parent=11 // pred_region
        _
      $region28: #{vae_forward.1} parent=11 // pred_fallthru
        _
      // Predicated region
      $region29: #{vae_forward.1} parent=11 // pred_check
        %p245 = pneg %p145
      $region30: #{vae_forward.1} parent=11 // pred_check_branch
        %247 = sbr.rel (%p245) target = $region32
      $region31: #{vae_forward.1} parent=11 // pred_region
        _
      $region32: #{vae_forward.1} parent=11 // pred_fallthru
        _
      // Predicated region
      $region33: #{vae_forward.1} parent=11 // pred_check
        %p248 = pneg %p166
      $region34: #{vae_forward.1} parent=11 // pred_check_branch
        %250 = sbr.rel (%p248) target = $region36
      $region35: #{vae_forward.1} parent=11 // pred_region
        _
      $region36: #{vae_forward.1} parent=11 // pred_fallthru
        _
    $region12: #{vae_forward.1} parent=5 // pred_fallthru
      _
    %p251 = scmp.lt.s32.totalorder %s14, 4
    // Predicated region
    $region37: #{vae_forward.1} parent=5 // pred_check
      %p252 = pneg %p251
    $region38: #{vae_forward.1} parent=5 // pred_check_branch
      %254 = sbr.rel (%p252) target = $region40
    $region39: #{vae_forward.1} parent=5 // pred_region
      // Predicated region
      $region41: #{vae_forward.1} parent=39 // pred_check
        %p255 = pneg %p34
      $region42: #{vae_forward.1} parent=39 // pred_check_branch
        %257 = sbr.rel (%p255) target = $region44
      $region43: #{vae_forward.1} parent=39 // pred_region
        %p258 = scmp.lt.s32.totalorder %s14, 3
        %s259 = scalar_select %p258, %s14, 3
        %s260 = smul.addr %s259, 8
        %s261 = scalar_lea.vmem %s0, %s260
      $region44: #{vae_forward.1} parent=39 // pred_fallthru
        _
      // Predicated region
      $region45: #{vae_forward.1} parent=39 // pred_check
        %p262 = pneg %p186
      $region46: #{vae_forward.1} parent=39 // pred_check_branch
        %264 = sbr.rel (%p262) target = $region48
      $region47: #{vae_forward.1} parent=39 // pred_region
        %p265 = scmp.lt.s32.totalorder %s14, 3
        %s266 = scalar_select %p265, %s14, 3
        %s267 = smul.addr %s266, 8
        %s268 = scalar_lea.vmem %s7, %s267
      $region48: #{vae_forward.1} parent=39 // pred_fallthru
        _
    $region40: #{vae_forward.1} parent=5 // pred_fallthru
      _
    %p269 = scmp.le.s32.totalorder 1, %s14
    %p270 = scmp.lt.s32.totalorder %s14, 5
    %p271 = pnand %p269, %p270
    %p272 = pneg %p271
    // Predicated region
    $region49: #{vae_forward.1} parent=5 // pred_check
      _
    $region50: #{vae_forward.1} parent=5 // pred_check_branch
      %274 = sbr.rel (%p271) target = $region52
    $region51: #{vae_forward.1} parent=5 // pred_region
      %s275 = ssub.s32 %s14, 1
      %p276 = scmp.lt.s32.totalorder %s19, 3
      %s277 = scalar_select %p276, %s19, 3
      %s278 = smul.addr %s277, 8
      %s279 = scalar_lea.vmem %s0, %s278
      %p280 = pneg %p40
      %p281 = pneg %p37
      %p282 = pneg %p61
      %p283 = pneg %p58
      %p284 = pneg %p82
      %p285 = pneg %p79
      %p286 = pneg %p103
      %p287 = pneg %p100
      %p288 = pneg %p124
      %p289 = pneg %p121
      %p290 = pneg %p145
      %p291 = pneg %p142
      %p292 = pneg %p166
      %p293 = pneg %p163
      %p294 = scmp.lt.s32.totalorder %s19, 3
      %s295 = scalar_select %p294, %s19, 3
      %s296 = smul.addr %s295, 8
      %s297 = scalar_lea.vmem %s7, %s296
      %p298 = pneg %p192
      %p299 = pneg %p189
      %p300 = pneg %p218
      %p301 = pneg %p215
      %p302 = scmp.lt.s32.totalorder %s19, 3
      %s303 = scalar_select %p302, %s19, 3
      %s304 = smul.addr %s303, 3
      %s305 = smul.addr %s304, 8
      %s306 = scalar_lea.vmem %s8, %s305
      %p307 = scmp.lt.s32.totalorder %s19, 3
      %s308 = scalar_select %p307, %s19, 3
      %s309 = smul.addr %s308, 8
      %s310 = scalar_lea.vmem %s0, %s309
      %p311 = scmp.lt.s32.totalorder %s19, 3
      %s312 = scalar_select %p311, %s19, 3
      %s313 = smul.addr %s312, 8
      %s314 = scalar_lea.vmem %s7, %s313
      %p315 = scmp.lt.s32.totalorder %s19, 3
      %s316 = scalar_select %p315, %s19, 3
      %s317 = smul.addr %s316, 3
      %s318 = smul.addr %s317, 8
      %s319 = scalar_lea.vmem %s8, %s318
      %v320 = vld [vmem:[%s310] sm:$0xff]
      %v321 = vld [vmem:[%s1] sm:$0xff]
      %v322 = vld [vmem:[%s1 + $0x8] sm:$0xff]
      %v323 = vld [vmem:[%s1 + $0x10] sm:$0xff]
      %v324 = vld [vmem:[%s1 + $0x18] sm:$0xff]
      %v325 = vld [vmem:[%s2] sm:$0x1]
      %v327 = vlaneseq
      %v328 = vshrl.u32 %v327, 7
      %v329 = vsub.s32 0, %v328
      %v330 = vrot.slane %v325, %v329
      %vm332 = vcmask 261120
      %v334 = vsel %vm332, %v320, 0
      %336 = vmatprep.subr.mxu0 0.0
      %337 = vmatpush1.msra.mxu0 0.0
      %338 = vmatprep.subr.mxu0 0.0
      %339 = vmatpush1.msra.mxu0 0.0
      %340 = vmatprep.subr.mxu0 0.0
      %341 = vmatpush1.msra.mxu0 0.0
      %342 = vmatprep.subr.mxu0 0.0
      %343 = vmatpush1.msra.mxu0 0.0
      %344 = vmatprep.subr.mxu0 0.0
      %345 = vmatpush1.msra.mxu0 0.0
      %346 = vmatprep.subr.mxu0 0.0
      %347 = vmatpush1.msra.mxu0 0.0
      %348 = vmatprep.subr.mxu0 0.0
      %349 = vmatpush1.msra.mxu0 0.0
      %350 = vmatprep.subr.mxu0 0.0
      %351 = vmatpush1.msra.mxu0 0.0
      %352 = vmatprep.subr.mxu0 0.0
      %353 = vmatpush1.msra.mxu0 0.0
      %354 = vmatprep.subr.mxu0 0.0
      %355 = vmatpush1.msra.mxu0 0.0
      %356 = vmatprep.subr.mxu0 0.0
      %357 = vmatpush1.msra.mxu0 0.0
      %358 = vmatprep.subr.mxu0 0.0
      %359 = vmatpush1.msra.mxu0 0.0
      %360 = vmatprep.subr.mxu0 0.0
      %361 = vmatpush1.msra.mxu0 %v324
      %362 = vmatprep.subr.mxu0 0.0
      %363 = vmatpush1.msra.mxu0 %v323
      %364 = vmatprep.subr.mxu0 0.0
      %365 = vmatpush1.msra.mxu0 %v322
      %366 = vmatprep.subr.mxu0 0.0
      %367 = vmatpush1.msra.mxu0 %v321
      %368 = vmatprep.subr.mxu0 0.0
      %369 = vmatpush2.msra.mxu0 0.0
      %370 = vmatprep.subr.mxu0 0.0
      %371 = vmatpush2.msra.mxu0 0.0
      %372 = vmatprep.subr.mxu0 0.0
      %373 = vmatpush2.msra.mxu0 0.0
      %374 = vmatprep.subr.mxu0 0.0
      %375 = vmatpush2.msra.mxu0 0.0
      %376 = vmatprep.subr.mxu0 0.0
      %377 = vmatpush2.msra.mxu0 0.0
      %378 = vmatprep.subr.mxu0 0.0
      %379 = vmatpush2.msra.mxu0 0.0
      %380 = vmatprep.subr.mxu0 0.0
      %381 = vmatpush2.msra.mxu0 0.0
      %382 = vmatprep.subr.mxu0 0.0
      %383 = vmatpush2.msra.mxu0 0.0
      %384 = vmatprep.subr.mxu0 0.0
      %385 = vmatpush2.msra.mxu0 0.0
      %386 = vmatprep.subr.mxu0 0.0
      %387 = vmatpush2.msra.mxu0 0.0
      %388 = vmatprep.subr.mxu0 0.0
      %389 = vmatpush2.msra.mxu0 0.0
      %390 = vmatprep.subr.mxu0 0.0
      %391 = vmatpush2.msra.mxu0 0.0
      %392 = vmatprep.subr.mxu0 0.0
      %393 = vmatpush2.msra.mxu0 0.0
      %394 = vmatprep.subr.mxu0 0.0
      %395 = vmatpush2.msra.mxu0 0.0
      %396 = vmatprep.subr.mxu0 0.0
      %397 = vmatpush2.msra.mxu0 0.0
      %398 = vmatprep.subr.mxu0 0.0
      %399 = vmatpush2.msra.mxu0 0.0
      %400 = vmatprep.mubr.f32.mxu0 0.0
      %401 = vmatmul.mubr.f32.gmra.mxu0 %v334
      %v402 = vpop.f32.mrf.mxu0
      %v403 = vadd.f32 %v330, %v402
      %v404 = vpop.f32.mrf.mxu0
      %405 = vdwg.mxu0
      %vm406 = vcmp.gt.f32.partialorder %v403, 0.0
      %v407 = vmin.f32 %v403, 0.0
      %v408 = vmul.f32 %v407, 1.442695
      %v409 = vpow.pop %v408
      %v410 = vsub.f32 %v409, 1.0
      %v411 = vsel %vm406, %v403, %v410
      %v412 = vld [vmem:[%s3] sm:$0xff]
      %v413 = vld [vmem:[%s3 + $0x8] sm:$0xff]
      %v414 = vld [vmem:[%s3 + $0x10] sm:$0xff]
      %v415 = vld [vmem:[%s3 + $0x18] sm:$0xff]
      %v416 = vld [vmem:[%s3 + $0x20] sm:$0xff]
      %v417 = vld [vmem:[%s3 + $0x28] sm:$0xff]
      %v418 = vld [vmem:[%s3 + $0x30] sm:$0xff]
      %v419 = vld [vmem:[%s3 + $0x38] sm:$0xff]
      %v420 = vld [vmem:[%s4] sm:$0x1]
      %v422 = vlaneseq
      %v423 = vshrl.u32 %v422, 7
      %v424 = vsub.s32 0, %v423
      %v425 = vrot.slane %v420, %v424
      %vm427 = vcmask 523264
      %v429 = vsel %vm427, %v411, 0
      %431 = vmatprep.subr.mxu0 0.0
      %432 = vmatpush1.msra.mxu0 0.0
      %433 = vmatprep.subr.mxu0 0.0
      %434 = vmatpush1.msra.mxu0 0.0
      %435 = vmatprep.subr.mxu0 0.0
      %436 = vmatpush1.msra.mxu0 0.0
      %437 = vmatprep.subr.mxu0 0.0
      %438 = vmatpush1.msra.mxu0 0.0
      %439 = vmatprep.subr.mxu0 0.0
      %440 = vmatpush1.msra.mxu0 0.0
      %441 = vmatprep.subr.mxu0 0.0
      %442 = vmatpush1.msra.mxu0 0.0
      %443 = vmatprep.subr.mxu0 0.0
      %444 = vmatpush1.msra.mxu0 0.0
      %445 = vmatprep.subr.mxu0 0.0
      %446 = vmatpush1.msra.mxu0 0.0
      %447 = vmatprep.subr.mxu0 0.0
      %448 = vmatpush1.msra.mxu0 %v419
      %449 = vmatprep.subr.mxu0 0.0
      %450 = vmatpush1.msra.mxu0 %v418
      %451 = vmatprep.subr.mxu0 0.0
      %452 = vmatpush1.msra.mxu0 %v417
      %453 = vmatprep.subr.mxu0 0.0
      %454 = vmatpush1.msra.mxu0 %v416
      %455 = vmatprep.subr.mxu0 0.0
      %456 = vmatpush1.msra.mxu0 %v415
      %457 = vmatprep.subr.mxu0 0.0
      %458 = vmatpush1.msra.mxu0 %v414
      %459 = vmatprep.subr.mxu0 0.0
      %460 = vmatpush1.msra.mxu0 %v413
      %461 = vmatprep.subr.mxu0 0.0
      %462 = vmatpush1.msra.mxu0 %v412
      %463 = vmatprep.subr.mxu0 0.0
      %464 = vmatpush2.msra.mxu0 0.0
      %465 = vmatprep.subr.mxu0 0.0
      %466 = vmatpush2.msra.mxu0 0.0
      %467 = vmatprep.subr.mxu0 0.0
      %468 = vmatpush2.msra.mxu0 0.0
      %469 = vmatprep.subr.mxu0 0.0
      %470 = vmatpush2.msra.mxu0 0.0
      %471 = vmatprep.subr.mxu0 0.0
      %472 = vmatpush2.msra.mxu0 0.0
      %473 = vmatprep.subr.mxu0 0.0
      %474 = vmatpush2.msra.mxu0 0.0
      %475 = vmatprep.subr.mxu0 0.0
      %476 = vmatpush2.msra.mxu0 0.0
      %477 = vmatprep.subr.mxu0 0.0
      %478 = vmatpush2.msra.mxu0 0.0
      %479 = vmatprep.subr.mxu0 0.0
      %480 = vmatpush2.msra.mxu0 0.0
      %481 = vmatprep.subr.mxu0 0.0
      %482 = vmatpush2.msra.mxu0 0.0
      %483 = vmatprep.subr.mxu0 0.0
      %484 = vmatpush2.msra.mxu0 0.0
      %485 = vmatprep.subr.mxu0 0.0
      %486 = vmatpush2.msra.mxu0 0.0
      %487 = vmatprep.subr.mxu0 0.0
      %488 = vmatpush2.msra.mxu0 0.0
      %489 = vmatprep.subr.mxu0 0.0
      %490 = vmatpush2.msra.mxu0 0.0
      %491 = vmatprep.subr.mxu0 0.0
      %492 = vmatpush2.msra.mxu0 0.0
      %493 = vmatprep.subr.mxu0 0.0
      %494 = vmatpush2.msra.mxu0 0.0
      %495 = vmatprep.mubr.f32.mxu0 0.0
      %496 = vmatmul.mubr.f32.gmra.mxu0 %v429
      %v497 = vpop.f32.mrf.mxu0
      %v498 = vadd.f32 %v425, %v497
      %v499 = vpop.f32.mrf.mxu0
      %500 = vdwg.mxu0
      %vm501 = vcmp.gt.f32.partialorder %v498, 0.0
      %v502 = vmin.f32 %v498, 0.0
      %v503 = vmul.f32 %v502, 1.442695
      %v504 = vpow.pop %v503
      %v505 = vsub.f32 %v504, 1.0
      %v506 = vsel %vm501, %v498, %v505
      %v507 = vld [vmem:[%s5] sm:$0xff]
      %v508 = vld [vmem:[%s5 + $0x8] sm:$0xff]
      %v509 = vld [vmem:[%s5 + $0x10] sm:$0xff]
      %v510 = vld [vmem:[%s5 + $0x18] sm:$0xff]
      %v511 = vld [vmem:[%s5 + $0x20] sm:$0xff]
      %v512 = vld [vmem:[%s5 + $0x28] sm:$0xff]
      %v513 = vld [vmem:[%s5 + $0x30] sm:$0xff]
      %v514 = vld [vmem:[%s5 + $0x38] sm:$0xff]
      %v515 = vld [vmem:[%s6] sm:$0x3]
      %v517 = vlaneseq
      %v518 = vshrl.u32 %v517, 7
      %v519 = vsub.s32 0, %v518
      %v520 = vrot.slane %v515, %v519
      %v521 = vlaneseq
      %v522 = vshrl.u32 %v521, 7
      %v523 = vsub.s32 1, %v522
      %v524 = vrot.slane %v515, %v523
      %v528 = vsel %vm332, %v506, 0
      %530 = vmatprep.subr.mxu0 0.0
      %531 = vmatpush1.msra.mxu0 0.0
      %532 = vmatprep.subr.mxu0 0.0
      %533 = vmatpush1.msra.mxu0 0.0
      %534 = vmatprep.subr.mxu0 0.0
      %535 = vmatpush1.msra.mxu0 0.0
      %536 = vmatprep.subr.mxu0 0.0
      %537 = vmatpush1.msra.mxu0 0.0
      %538 = vmatprep.subr.mxu0 0.0
      %539 = vmatpush1.msra.mxu0 0.0
      %540 = vmatprep.subr.mxu0 0.0
      %541 = vmatpush1.msra.mxu0 0.0
      %542 = vmatprep.subr.mxu0 0.0
      %543 = vmatpush1.msra.mxu0 0.0
      %544 = vmatprep.subr.mxu0 0.0
      %545 = vmatpush1.msra.mxu0 0.0
      %546 = vmatprep.subr.mxu0 0.0
      %547 = vmatpush1.msra.mxu0 0.0
      %548 = vmatprep.subr.mxu0 0.0
      %549 = vmatpush1.msra.mxu0 0.0
      %550 = vmatprep.subr.mxu0 0.0
      %551 = vmatpush1.msra.mxu0 0.0
      %552 = vmatprep.subr.mxu0 0.0
      %553 = vmatpush1.msra.mxu0 0.0
      %554 = vmatprep.subr.mxu0 %v514
      %555 = vmatpush1.msra.mxu0 %v513
      %556 = vmatprep.subr.mxu0 %v512
      %557 = vmatpush1.msra.mxu0 %v511
      %558 = vmatprep.subr.mxu0 %v510
      %559 = vmatpush1.msra.mxu0 %v509
      %560 = vmatprep.subr.mxu0 %v508
      %561 = vmatpush1.msra.mxu0 %v507
      %562 = vmatprep.subr.mxu0 0.0
      %563 = vmatpush2.msra.mxu0 0.0
      %564 = vmatprep.subr.mxu0 0.0
      %565 = vmatpush2.msra.mxu0 0.0
      %566 = vmatprep.subr.mxu0 0.0
      %567 = vmatpush2.msra.mxu0 0.0
      %568 = vmatprep.subr.mxu0 0.0
      %569 = vmatpush2.msra.mxu0 0.0
      %570 = vmatprep.subr.mxu0 0.0
      %571 = vmatpush2.msra.mxu0 0.0
      %572 = vmatprep.subr.mxu0 0.0
      %573 = vmatpush2.msra.mxu0 0.0
      %574 = vmatprep.subr.mxu0 0.0
      %575 = vmatpush2.msra.mxu0 0.0
      %576 = vmatprep.subr.mxu0 0.0
      %577 = vmatpush2.msra.mxu0 0.0
      %578 = vmatprep.subr.mxu0 0.0
      %579 = vmatpush2.msra.mxu0 0.0
      %580 = vmatprep.subr.mxu0 0.0
      %581 = vmatpush2.msra.mxu0 0.0
      %582 = vmatprep.subr.mxu0 0.0
      %583 = vmatpush2.msra.mxu0 0.0
      %584 = vmatprep.subr.mxu0 0.0
      %585 = vmatpush2.msra.mxu0 0.0
      %586 = vmatprep.subr.mxu0 0.0
      %587 = vmatpush2.msra.mxu0 0.0
      %588 = vmatprep.subr.mxu0 0.0
      %589 = vmatpush2.msra.mxu0 0.0
      %590 = vmatprep.subr.mxu0 0.0
      %591 = vmatpush2.msra.mxu0 0.0
      %592 = vmatprep.subr.mxu0 0.0
      %593 = vmatpush2.msra.mxu0 0.0
      %594 = vmatprep.mubr.f32.mxu0 0.0
      %595 = vmatmul.mubr.f32.gmra.mxu0 %v528
      %v596 = vpop.f32.mrf.mxu0
      %v597 = vadd.f32 %v520, %v596
      %v598 = vpop.f32.mrf.mxu0
      %v599 = vadd.f32 %v524, %v598
      %600 = vdwg.mxu0
      %v601 = vmul.f32 %v599, 1.442695
      %v602 = vpow.pop %v601
      %v603 = vld [vmem:[%s314] sm:$0xff]
      %v604 = vmul.f32 %v602, %v603
      %v605 = vadd.f32 %v597, %v604
      %606 = vst [vmem:[%s319] sm:$0xff] %v605
      %607 = vst [vmem:[%s319 + $0x8] sm:$0xff] %v597
      %608 = vst [vmem:[%s319 + $0x10] sm:$0xff] %v602
      %p609 = scmp.lt.s32.totalorder %s19, 3
      %s610 = scalar_select %p609, %s19, 3
      %s611 = smul.addr %s610, 3
      %s612 = smul.addr %s611, 8
      %s613 = scalar_lea.vmem %s8, %s612
      // Predicated region
      $region53: #{vae_forward.1} parent=51 // pred_check
        %p614 = pneg %p215
      $region54: #{vae_forward.1} parent=51 // pred_check_branch
        %616 = sbr.rel (%p614) target = $region56
      $region55: #{vae_forward.1} parent=51 // pred_region
        _
      $region56: #{vae_forward.1} parent=51 // pred_fallthru
        _
    $region52: #{vae_forward.1} parent=5 // pred_fallthru
      _
    %p617 = scmp.le.s32.totalorder 2, %s14
    // Predicated region
    $region57: #{vae_forward.1} parent=5 // pred_check
      %p618 = pneg %p617
    $region58: #{vae_forward.1} parent=5 // pred_check_branch
      %620 = sbr.rel (%p618) target = $region60
    $region59: #{vae_forward.1} parent=5 // pred_region
      %s621 = ssub.s32 %s14, 2
      // Predicated region
      $region61: #{vae_forward.1} parent=59 // pred_check
        %p622 = pneg %p221
      $region62: #{vae_forward.1} parent=59 // pred_check_branch
        %624 = sbr.rel (%p622) target = $region64
      $region63: #{vae_forward.1} parent=59 // pred_region
        %p625 = scmp.lt.s32.totalorder %s20, 3
        %s626 = scalar_select %p625, %s20, 3
        %s627 = smul.addr %s626, 3
        %s628 = smul.addr %s627, 8
        %s629 = scalar_lea.vmem %s8, %s628
      $region64: #{vae_forward.1} parent=59 // pred_fallthru
        _
    $region60: #{vae_forward.1} parent=5 // pred_fallthru
      _
  $region6: #{vae_forward.1} parent=0 // loop_footer
    %s18 = sadd.s32 1, %s14
  $region7: #{vae_forward.1} parent=0 // loop_footer_branch
    %13 = sbr.rel target = $region3
  $region8: #{vae_forward.1} parent=0 // loop_exit
    _

</llo_original>
